<compile_context>
chip_gen: v6e
topology: v6e:2x2x1
jax: 0.10.0
libtpu: 0.0.40
codegen_flags: <defaults>
</compile_context>

<pallas_src>
import functools

import jax
import jax.numpy as jnp
from jax.experimental import pallas as pl
from jax.experimental.pallas import tpu as pltpu


def _round_up(x, m):
    return ((x + m - 1) // m) * m


def _dueling_kernel(x_ref, w1_ref, b1_ref, wh_ref, bh_ref, wo_ref, bo_ref,
                    out_ref, *, inv_action_dim):
    # feature = ReLU(x @ W1 + b1)                         -> (Bb, H)
    feat = jnp.dot(x_ref[...], w1_ref[...], preferred_element_type=jnp.float32)
    feat = jnp.maximum(feat + b1_ref[...], 0.0)

    # fused value/advantage hidden layers (one matmul)    -> (Bb, 2H)
    hid = jnp.dot(feat, wh_ref[...], preferred_element_type=jnp.float32)
    hid = jnp.maximum(hid + bh_ref[...], 0.0)

    # fused block-diagonal output heads (one matmul)      -> (Bb, head_w)
    #   col 0        = V(s)
    #   cols 1..1+A  = A(s, a)
    #   rest         = 0 (zero-padded weights/bias)
    head = jnp.dot(hid, wo_ref[...], preferred_element_type=jnp.float32) + bo_ref[...]

    val = head[:, 0:1]
    total = jnp.sum(head, axis=-1, keepdims=True)      # = val + sum(adv); padded cols are 0
    adv_mean = (total - val) * inv_action_dim          # divide by TRUE action_dim

    # Lane-dense dueling combine: cols 1..1+A hold Q = V + A - mean(A); other cols are
    # garbage and are sliced off by the wrapper.
    out_ref[...] = (head + (val - adv_mean)).astype(out_ref.dtype)


def pack_params(params, state_dim, action_dim, hidden):
    """Fuse/zero-pad raw per-layer params into the kernel's fused layout (done once)."""
    w1, b1, wv1, bv1, wv2, bv2, wa1, ba1, wa2, ba2 = params
    k_pad = _round_up(max(state_dim, 1), 128)
    head_w = _round_up(1 + action_dim, 128)

    w1_p = jnp.zeros((k_pad, hidden), jnp.float32).at[:state_dim, :].set(w1)
    b1_p = b1                                                    # (1, H)

    wh = jnp.concatenate([wv1, wa1], axis=1)                     # (H, 2H)
    bh = jnp.concatenate([bv1, ba1], axis=1)                     # (1, 2H)

    wo = jnp.zeros((2 * hidden, head_w), jnp.float32)
    wo = wo.at[:hidden, 0:1].set(wv2)                            # value head
    wo = wo.at[hidden:, 1:1 + action_dim].set(wa2)               # advantage head
    bo = jnp.zeros((1, head_w), jnp.float32)
    bo = bo.at[:, 0:1].set(bv2)
    bo = bo.at[:, 1:1 + action_dim].set(ba2)
    return (w1_p, b1_p, wh, bh, wo, bo)


@functools.partial(jax.jit, static_argnames=("action_dim",))
def dueling_q_forward(x, packed, action_dim):
    """x: (B, state_dim) float32. Returns Q-values (B, action_dim) float32."""
    w1, b1, wh, bh, wo, bo = packed
    batch, state_dim = x.shape
    k_pad, hidden = w1.shape
    hidden2 = wh.shape[1]
    head_w = wo.shape[1]

    # Pad batch to a sublane-friendly tile; tile the batch so large replay batches
    # never blow scoped VMEM (weights stay resident across the grid).
    block_b = min(512, _round_up(batch, 8))
    b_pad = _round_up(batch, block_b)

    x_pad = jnp.pad(x.astype(jnp.float32),
                    ((0, b_pad - batch), (0, k_pad - state_dim)))

    kernel = functools.partial(_dueling_kernel, inv_action_dim=1.0 / action_dim)

    out = pl.pallas_call(
        kernel,
        out_shape=jax.ShapeDtypeStruct((b_pad, head_w), jnp.float32),
        grid=(b_pad // block_b,),
        in_specs=[
            pl.BlockSpec((block_b, k_pad), lambda i: (i, 0)),     # x tile
            pl.BlockSpec((k_pad, hidden), lambda i: (0, 0)),      # W1 (resident)
            pl.BlockSpec((1, hidden), lambda i: (0, 0)),          # b1
            pl.BlockSpec((hidden, hidden2), lambda i: (0, 0)),    # fused hidden W
            pl.BlockSpec((1, hidden2), lambda i: (0, 0)),         # fused hidden b
            pl.BlockSpec((hidden2, head_w), lambda i: (0, 0)),    # fused head W
            pl.BlockSpec((1, head_w), lambda i: (0, 0)),          # fused head b
        ],
        out_specs=pl.BlockSpec((block_b, head_w), lambda i: (i, 0)),
        compiler_params=pltpu.CompilerParams(
            dimension_semantics=("parallel",)),
    )(x_pad, w1, b1, wh, bh, wo, bo)

    # Real Q values live in cols 1..1+action_dim of the lane-dense output.
    return out[:batch, 1:1 + action_dim]


def init_params(key, state_dim, action_dim, hidden=128):
    """Init mimicking nn.Linear's U(-1/sqrt(fan_in), 1/sqrt(fan_in)).
    Weights are (in_features, out_features); biases (1, out_features)."""
    def linear(key, fan_in, fan_out):
        kw, kb = jax.random.split(key)
        bound = 1.0 / jnp.sqrt(fan_in)
        w = jax.random.uniform(kw, (fan_in, fan_out), jnp.float32, -bound, bound)
        b = jax.random.uniform(kb, (1, fan_out), jnp.float32, -bound, bound)
        return w, b

    k1, k2, k3, k4, k5 = jax.random.split(key, 5)
    w1, b1 = linear(k1, state_dim, hidden)        # feature
    wv1, bv1 = linear(k2, hidden, hidden)         # value stream hidden
    wv2, bv2 = linear(k3, hidden, 1)              # value stream out
    wa1, ba1 = linear(k4, hidden, hidden)         # adv stream hidden
    wa2, ba2 = linear(k5, hidden, action_dim)     # adv stream out
    return (w1, b1, wv1, bv1, wv2, bv2, wa1, ba1, wa2, ba2)


def reference_forward(x, params):
    """Pure-JAX reference mirroring the PyTorch module's forward."""
    (w1, b1, wv1, bv1, wv2, bv2, wa1, ba1, wa2, ba2) = params
    feat = jnp.maximum(x @ w1 + b1, 0.0)
    val = jnp.maximum(feat @ wv1 + bv1, 0.0) @ wv2 + bv2
    adv = jnp.maximum(feat @ wa1 + ba1, 0.0) @ wa2 + ba2
    return val + adv - adv.mean(axis=1, keepdims=True)


if __name__ == "__main__":
    # LunarLander-ish shapes: batch=2, state_dim=8, action_dim=4, hidden=128.
    batch, state_dim, action_dim, hidden = 2, 8, 4, 128

    key = jax.random.PRNGKey(0)
    kx, kp = jax.random.split(key)
    x = jax.random.normal(kx, (batch, state_dim), dtype=jnp.float32)
    params = init_params(kp, state_dim, action_dim, hidden)
    packed = pack_params(params, state_dim, action_dim, hidden)

    q = dueling_q_forward(x, packed, action_dim)
    q = jax.block_until_ready(q)

    q_ref = reference_forward(x, params)
    assert q.shape == (batch, action_dim), q.shape
    assert jnp.allclose(q, q_ref, atol=1e-5, rtol=1e-5), (q, q_ref)

    print("KERNEL_OK")
</pallas_src>

<mosaic_0001>
module attributes {stable_mosaic.version = 11 : i64} {
  func.func @_dueling_kernel(%arg0: i32, %arg1: memref<8x128xf32, #tpu.memory_space<vmem>>, %arg2: memref<128x128xf32, #tpu.memory_space<vmem>>, %arg3: memref<1x128xf32, #tpu.memory_space<vmem>>, %arg4: memref<128x256xf32, #tpu.memory_space<vmem>>, %arg5: memref<1x256xf32, #tpu.memory_space<vmem>>, %arg6: memref<256x128xf32, #tpu.memory_space<vmem>>, %arg7: memref<1x128xf32, #tpu.memory_space<vmem>>, %arg8: memref<8x128xf32, #tpu.memory_space<vmem>>) attributes {dimension_semantics = [#tpu.dimension_semantics<parallel>], iteration_bounds = array<i64: 1>, scalar_prefetch = 0 : i64, scratch_operands = 0 : i64, tpu.core_type = #tpu.core_type<tc>, window_params = [{transform_indices = @transform_0, window_bounds = array<i64: 8, 128>}, {pipeline_mode = #tpu.pipeline_mode<synchronous>, transform_indices = @transform_1, window_bounds = array<i64: 128, 128>}, {pipeline_mode = #tpu.pipeline_mode<synchronous>, transform_indices = @transform_2, window_bounds = array<i64: 1, 128>}, {pipeline_mode = #tpu.pipeline_mode<synchronous>, transform_indices = @transform_3, window_bounds = array<i64: 128, 256>}, {pipeline_mode = #tpu.pipeline_mode<synchronous>, transform_indices = @transform_4, window_bounds = array<i64: 1, 256>}, {pipeline_mode = #tpu.pipeline_mode<synchronous>, transform_indices = @transform_5, window_bounds = array<i64: 256, 128>}, {pipeline_mode = #tpu.pipeline_mode<synchronous>, transform_indices = @transform_6, window_bounds = array<i64: 1, 128>}, {transform_indices = @transform_7, window_bounds = array<i64: 8, 128>}]} {
    %c0 = arith.constant 0 : index
    %c0_0 = arith.constant 0 : index
    %0 = vector.load %arg1[%c0, %c0_0] : memref<8x128xf32, #tpu.memory_space<vmem>>, vector<8x128xf32>
    %c0_1 = arith.constant 0 : index
    %c0_2 = arith.constant 0 : index
    %1 = vector.load %arg2[%c0_1, %c0_2] : memref<128x128xf32, #tpu.memory_space<vmem>>, vector<128x128xf32>
    %cst = arith.constant dense<0.000000e+00> : vector<8x128xf32>
    %2 = tpu.matmul %0, %1, %cst {dimension_numbers = #tpu.dot_dimension_numbers<[1], [0], [0], [1], [0, 0, 1, 1], [], []>} : vector<8x128xf32>, vector<128x128xf32>, vector<8x128xf32> -> vector<8x128xf32>
    %c0_3 = arith.constant 0 : index
    %c0_4 = arith.constant 0 : index
    %3 = vector.load %arg3[%c0_3, %c0_4] : memref<1x128xf32, #tpu.memory_space<vmem>>, vector<1x128xf32>
    %4 = vector.broadcast %3 : vector<1x128xf32> to vector<8x128xf32>
    %5 = arith.addf %2, %4 : vector<8x128xf32>
    %cst_5 = arith.constant 0.000000e+00 : f32
    %6 = vector.broadcast %cst_5 : f32 to vector<8x128xf32>
    %7 = arith.maximumf %5, %6 : vector<8x128xf32>
    %c0_6 = arith.constant 0 : index
    %c0_7 = arith.constant 0 : index
    %8 = vector.load %arg4[%c0_6, %c0_7] : memref<128x256xf32, #tpu.memory_space<vmem>>, vector<128x256xf32>
    %cst_8 = arith.constant dense<0.000000e+00> : vector<8x256xf32>
    %9 = tpu.matmul %7, %8, %cst_8 {dimension_numbers = #tpu.dot_dimension_numbers<[1], [0], [0], [1], [0, 0, 1, 1], [], []>} : vector<8x128xf32>, vector<128x256xf32>, vector<8x256xf32> -> vector<8x256xf32>
    %c0_9 = arith.constant 0 : index
    %c0_10 = arith.constant 0 : index
    %10 = vector.load %arg5[%c0_9, %c0_10] : memref<1x256xf32, #tpu.memory_space<vmem>>, vector<1x256xf32>
    %11 = vector.broadcast %10 : vector<1x256xf32> to vector<8x256xf32>
    %12 = arith.addf %9, %11 : vector<8x256xf32>
    %cst_11 = arith.constant 0.000000e+00 : f32
    %13 = vector.broadcast %cst_11 : f32 to vector<8x256xf32>
    %14 = arith.maximumf %12, %13 : vector<8x256xf32>
    %c0_12 = arith.constant 0 : index
    %c0_13 = arith.constant 0 : index
    %15 = vector.load %arg6[%c0_12, %c0_13] : memref<256x128xf32, #tpu.memory_space<vmem>>, vector<256x128xf32>
    %cst_14 = arith.constant dense<0.000000e+00> : vector<8x128xf32>
    %16 = tpu.matmul %14, %15, %cst_14 {dimension_numbers = #tpu.dot_dimension_numbers<[1], [0], [0], [1], [0, 0, 1, 1], [], []>} : vector<8x256xf32>, vector<256x128xf32>, vector<8x128xf32> -> vector<8x128xf32>
    %c0_15 = arith.constant 0 : index
    %c0_16 = arith.constant 0 : index
    %17 = vector.load %arg7[%c0_15, %c0_16] : memref<1x128xf32, #tpu.memory_space<vmem>>, vector<1x128xf32>
    %18 = vector.broadcast %17 : vector<1x128xf32> to vector<8x128xf32>
    %19 = arith.addf %16, %18 : vector<8x128xf32>
    %20 = vector.extract_strided_slice %19 {offsets = [0, 0], sizes = [8, 1], strides = [1, 1]} : vector<8x128xf32> to vector<8x1xf32>
    %cst_17 = arith.constant dense<0.000000e+00> : vector<8xf32>
    %21 = vector.multi_reduction <add>, %19, %cst_17 [1] : vector<8x128xf32> to vector<8xf32>
    %22 = vector.shape_cast %21 : vector<8xf32> to vector<8x1xf32>
    %23 = arith.subf %22, %20 : vector<8x1xf32>
    %cst_18 = arith.constant 2.500000e-01 : f32
    %24 = vector.broadcast %cst_18 : f32 to vector<8x1xf32>
    %25 = arith.mulf %23, %24 : vector<8x1xf32>
    %26 = arith.subf %20, %25 : vector<8x1xf32>
    %27 = vector.broadcast %26 : vector<8x1xf32> to vector<8x128xf32>
    %28 = arith.addf %19, %27 : vector<8x128xf32>
    %c0_19 = arith.constant 0 : index
    %c0_20 = arith.constant 0 : index
    %29 = vector.load %arg8[%c0_19, %c0_20] : memref<8x128xf32, #tpu.memory_space<vmem>>, vector<8x128xf32>
    tpu.vector_store %arg8[%c0_19, %c0_20], %28 {strides = array<i32>} : memref<8x128xf32, #tpu.memory_space<vmem>>, vector<8x128xf32>,
    return
  }
  func.func @transform_0(%arg0: i32) -> (i32, i32) {
    %c0_i32 = arith.constant 0 : i32
    %c0_i32_0 = arith.constant 0 : i32
    return %arg0, %c0_i32 : i32, i32
  }
  func.func @transform_1(%arg0: i32) -> (i32, i32) {
    %c0_i32 = arith.constant 0 : i32
    %c0_i32_0 = arith.constant 0 : i32
    %c0_i32_1 = arith.constant 0 : i32
    return %c0_i32, %c0_i32_0 : i32, i32
  }
  func.func @transform_2(%arg0: i32) -> (i32, i32) {
    %c0_i32 = arith.constant 0 : i32
    %c0_i32_0 = arith.constant 0 : i32
    %c0_i32_1 = arith.constant 0 : i32
    return %c0_i32, %c0_i32_0 : i32, i32
  }
  func.func @transform_3(%arg0: i32) -> (i32, i32) {
    %c0_i32 = arith.constant 0 : i32
    %c0_i32_0 = arith.constant 0 : i32
    %c0_i32_1 = arith.constant 0 : i32
    return %c0_i32, %c0_i32_0 : i32, i32
  }
  func.func @transform_4(%arg0: i32) -> (i32, i32) {
    %c0_i32 = arith.constant 0 : i32
    %c0_i32_0 = arith.constant 0 : i32
    %c0_i32_1 = arith.constant 0 : i32
    return %c0_i32, %c0_i32_0 : i32, i32
  }
  func.func @transform_5(%arg0: i32) -> (i32, i32) {
    %c0_i32 = arith.constant 0 : i32
    %c0_i32_0 = arith.constant 0 : i32
    %c0_i32_1 = arith.constant 0 : i32
    return %c0_i32, %c0_i32_0 : i32, i32
  }
  func.func @transform_6(%arg0: i32) -> (i32, i32) {
    %c0_i32 = arith.constant 0 : i32
    %c0_i32_0 = arith.constant 0 : i32
    %c0_i32_1 = arith.constant 0 : i32
    return %c0_i32, %c0_i32_0 : i32, i32
  }
  func.func @transform_7(%arg0: i32) -> (i32, i32) {
    %c0_i32 = arith.constant 0 : i32
    %c0_i32_0 = arith.constant 0 : i32
    return %arg0, %c0_i32 : i32, i32
  }
}

</mosaic_0001>

<llo_original>
// kernel: dueling_q_forward.1
$region0: #{dueling_q_forward.1}
  #allocation0 [shape = 'u32[]', space=smem, size = 0x4, offset = 0x4, fixed_abs, tag = 'smem constant byte address 0x4 - core index']
  #allocation1 [shape = 'u32[144,128]{1,0:T(1,128)}', space=vmem, size = 0x12000, scoped, tag = 'internal scratch']
  %s0 = inlined_call_operand.vmem [shape: f32[8,128], index: 0, kind: input, shape index: {}]
  %s1 = inlined_call_operand.hbm [shape: f32[128,128], index: 1, kind: input, shape index: {}]
  %s2 = inlined_call_operand.vmem [shape: f32[1,128], index: 2, kind: input, shape index: {}]
  %s3 = inlined_call_operand.hbm [shape: f32[128,256], index: 3, kind: input, shape index: {}]
  %s4 = inlined_call_operand.vmem [shape: f32[1,256], index: 4, kind: input, shape index: {}]
  %s5 = inlined_call_operand.hbm [shape: f32[256,128], index: 5, kind: input, shape index: {}]
  %s6 = inlined_call_operand.vmem [shape: f32[1,128], index: 6, kind: input, shape index: {}]
  %s7 = inlined_call_operand.vmem [shape: f32[8,128], index: 7, kind: output, shape index: {}]
  %s8 = sld [smem:[#allocation0]]
  $region50: #{dueling_q_forward.1} parent=0
    _
  %s10 = ssub.s32 1, %s8
  %s11 = scalar_select 0, %s10, %s8
  $region1: #{dueling_q_forward.1} parent=0
    #allocation2 [shape = 'u8[65536]{0}', space=vmem, size = 0x10000, scoped, tag = 'input window, operand 1, single buffered']
    #allocation3 [shape = 's32[1]{0}', space=sflag, size = 0x4, scoped, tag = 'scoped memory for dueling_q_forward.1']
    #allocation4 [shape = 'u8[131072]{0}', space=vmem, size = 0x20000, scoped, tag = 'input window, operand 3, single buffered']
    #allocation5 [shape = 's32[1]{0}', space=sflag, size = 0x4, scoped, tag = 'scoped memory for dueling_q_forward.1']
    #allocation6 [shape = 'u8[131072]{0}', space=vmem, size = 0x20000, scoped, tag = 'input window, operand 5, single buffered']
    %12 = vsyncpa [#allocation3], 0
    %13 = vsyncpa [#allocation5], 0
    // Predicated region
    $region2: #{dueling_q_forward.1} parent=1 // pred_check
      _
    $region3: #{dueling_q_forward.1} parent=1 // pred_check_branch
      %15 = sbr.rel (0) target = $region5
    $region4: #{dueling_q_forward.1} parent=1 // pred_region
      _
    $region5: #{dueling_q_forward.1} parent=1 // pred_fallthru
      _
    // Predicated region
    $region6: #{dueling_q_forward.1} parent=1 // pred_check
      _
    $region7: #{dueling_q_forward.1} parent=1 // pred_check_branch
      %17 = sbr.rel (0) target = $region9
    $region8: #{dueling_q_forward.1} parent=1 // pred_region
      %s19 = ssub.s32 2048, 2048
      %20 = vsyncadd [#allocation3], %s19
      %s21 = sshll.u32 [#allocation2], 4
      %s22 = int_to_ptr.vmem [resolvable:$true] %s21
      %27 = dma.hbm_to_vmem [thread:$0]  %s1, 2048, %s22, [#allocation3], 128, 128, 8
    $region9: #{dueling_q_forward.1} parent=1 // pred_fallthru
      _
    // Predicated region
    $region10: #{dueling_q_forward.1} parent=1 // pred_check
      _
    $region11: #{dueling_q_forward.1} parent=1 // pred_check_branch
      %29 = sbr.rel (0) target = $region13
    $region12: #{dueling_q_forward.1} parent=1 // pred_region
      _
    $region13: #{dueling_q_forward.1} parent=1 // pred_fallthru
      _
    // Predicated region
    $region14: #{dueling_q_forward.1} parent=1 // pred_check
      _
    $region15: #{dueling_q_forward.1} parent=1 // pred_check_branch
      %31 = sbr.rel (0) target = $region17
    $region16: #{dueling_q_forward.1} parent=1 // pred_region
      %s33 = ssub.s32 4096, 4096
      %34 = vsyncadd [#allocation5], %s33
      %s35 = sshll.u32 [#allocation4], 4
      %s36 = int_to_ptr.vmem [resolvable:$true] %s35
      %41 = dma.hbm_to_vmem [thread:$0]  %s3, 4096, %s36, [#allocation5], 256, 256, 16
    $region17: #{dueling_q_forward.1} parent=1 // pred_fallthru
      _
    // Predicated region
    $region18: #{dueling_q_forward.1} parent=1 // pred_check
      _
    $region19: #{dueling_q_forward.1} parent=1 // pred_check_branch
      %43 = sbr.rel (0) target = $region21
    $region20: #{dueling_q_forward.1} parent=1 // pred_region
      _
    $region21: #{dueling_q_forward.1} parent=1 // pred_fallthru
      _
    // Predicated region
    $region22: #{dueling_q_forward.1} parent=1 // pred_check
      _
    $region23: #{dueling_q_forward.1} parent=1 // pred_check_branch
      %45 = sbr.rel (0) target = $region25
    $region24: #{dueling_q_forward.1} parent=1 // pred_region
      %s47 = ssub.s32 4096, 4096
      %48 = vsyncadd [#allocation5], %s47
      %s49 = sshll.u32 [#allocation6], 4
      %s50 = int_to_ptr.vmem [resolvable:$true] %s49
      %55 = dma.hbm_to_vmem [thread:$0]  %s5, 4096, %s50, [#allocation5], 128, 128, 8
    $region25: #{dueling_q_forward.1} parent=1 // pred_fallthru
      _
    // Predicated region
    $region26: #{dueling_q_forward.1} parent=1 // pred_check
      _
    $region27: #{dueling_q_forward.1} parent=1 // pred_check_branch
      %57 = sbr.rel (0) target = $region29
    $region28: #{dueling_q_forward.1} parent=1 // pred_region
      _
    $region29: #{dueling_q_forward.1} parent=1 // pred_fallthru
      _
    // Predicated region
    $region30: #{dueling_q_forward.1} parent=1 // pred_check
      _
    $region31: #{dueling_q_forward.1} parent=1 // pred_check_branch
      %59 = sbr.rel (0) target = $region33
    $region32: #{dueling_q_forward.1} parent=1 // pred_region
      %60 = dma.done [#allocation3], 2048
    $region33: #{dueling_q_forward.1} parent=1 // pred_fallthru
      _
    // Predicated region
    $region34: #{dueling_q_forward.1} parent=1 // pred_check
      _
    $region35: #{dueling_q_forward.1} parent=1 // pred_check_branch
      %62 = sbr.rel (0) target = $region37
    $region36: #{dueling_q_forward.1} parent=1 // pred_region
      %63 = dma.done [#allocation5], 4096
    $region37: #{dueling_q_forward.1} parent=1 // pred_fallthru
      _
    // Predicated region
    $region38: #{dueling_q_forward.1} parent=1 // pred_check
      _
    $region39: #{dueling_q_forward.1} parent=1 // pred_check_branch
      %65 = sbr.rel (0) target = $region41
    $region40: #{dueling_q_forward.1} parent=1 // pred_region
      %66 = dma.done [#allocation5], 4096
    $region41: #{dueling_q_forward.1} parent=1 // pred_fallthru
      _
    %v67 = vld [vmem:[%s0] sm:$0xff]
    %v68 = vld [vmem:[#allocation2] sm:$0xff]
    %v69 = vld [vmem:[#allocation2 + $0x8] sm:$0xff]
    %v70 = vld [vmem:[#allocation2 + $0x10] sm:$0xff]
    %v71 = vld [vmem:[#allocation2 + $0x18] sm:$0xff]
    %v72 = vld [vmem:[#allocation2 + $0x20] sm:$0xff]
    %v73 = vld [vmem:[#allocation2 + $0x28] sm:$0xff]
    %v74 = vld [vmem:[#allocation2 + $0x30] sm:$0xff]
    %v75 = vld [vmem:[#allocation2 + $0x38] sm:$0xff]
    %v76 = vld [vmem:[#allocation2 + $0x40] sm:$0xff]
    %v77 = vld [vmem:[#allocation2 + $0x48] sm:$0xff]
    %v78 = vld [vmem:[#allocation2 + $0x50] sm:$0xff]
    %v79 = vld [vmem:[#allocation2 + $0x58] sm:$0xff]
    %v80 = vld [vmem:[#allocation2 + $0x60] sm:$0xff]
    %v81 = vld [vmem:[#allocation2 + $0x68] sm:$0xff]
    %v82 = vld [vmem:[#allocation2 + $0x70] sm:$0xff]
    %v83 = vld [vmem:[#allocation2 + $0x78] sm:$0xff]
    %v84 = vld [vmem:[%s2] sm:$0x1]
    %v86 = vlaneseq
    %v87 = vshrl.u32 %v86, 7
    %v88 = vsub.s32 0, %v87
    %v89 = vrot.slane %v84, %v88
    %91 = vmatprep.subr.mxu0 0.0
    %92 = vmatpush1.msra.mxu0 %v83
    %93 = vmatprep.subr.mxu0 0.0
    %94 = vmatpush1.msra.mxu0 %v82
    %95 = vmatprep.subr.mxu0 0.0
    %96 = vmatpush1.msra.mxu0 %v81
    %97 = vmatprep.subr.mxu0 0.0
    %98 = vmatpush1.msra.mxu0 %v80
    %99 = vmatprep.subr.mxu0 0.0
    %100 = vmatpush1.msra.mxu0 %v79
    %101 = vmatprep.subr.mxu0 0.0
    %102 = vmatpush1.msra.mxu0 %v78
    %103 = vmatprep.subr.mxu0 0.0
    %104 = vmatpush1.msra.mxu0 %v77
    %105 = vmatprep.subr.mxu0 0.0
    %106 = vmatpush1.msra.mxu0 %v76
    %107 = vmatprep.subr.mxu0 0.0
    %108 = vmatpush1.msra.mxu0 %v75
    %109 = vmatprep.subr.mxu0 0.0
    %110 = vmatpush1.msra.mxu0 %v74
    %111 = vmatprep.subr.mxu0 0.0
    %112 = vmatpush1.msra.mxu0 %v73
    %113 = vmatprep.subr.mxu0 0.0
    %114 = vmatpush1.msra.mxu0 %v72
    %115 = vmatprep.subr.mxu0 0.0
    %116 = vmatpush1.msra.mxu0 %v71
    %117 = vmatprep.subr.mxu0 0.0
    %118 = vmatpush1.msra.mxu0 %v70
    %119 = vmatprep.subr.mxu0 0.0
    %120 = vmatpush1.msra.mxu0 %v69
    %121 = vmatprep.subr.mxu0 0.0
    %122 = vmatpush1.msra.mxu0 %v68
    %123 = vmatprep.subr.mxu0 0.0
    %124 = vmatpush2.msra.mxu0 0.0
    %125 = vmatprep.subr.mxu0 0.0
    %126 = vmatpush2.msra.mxu0 0.0
    %127 = vmatprep.subr.mxu0 0.0
    %128 = vmatpush2.msra.mxu0 0.0
    %129 = vmatprep.subr.mxu0 0.0
    %130 = vmatpush2.msra.mxu0 0.0
    %131 = vmatprep.subr.mxu0 0.0
    %132 = vmatpush2.msra.mxu0 0.0
    %133 = vmatprep.subr.mxu0 0.0
    %134 = vmatpush2.msra.mxu0 0.0
    %135 = vmatprep.subr.mxu0 0.0
    %136 = vmatpush2.msra.mxu0 0.0
    %137 = vmatprep.subr.mxu0 0.0
    %138 = vmatpush2.msra.mxu0 0.0
    %139 = vmatprep.subr.mxu0 0.0
    %140 = vmatpush2.msra.mxu0 0.0
    %141 = vmatprep.subr.mxu0 0.0
    %142 = vmatpush2.msra.mxu0 0.0
    %143 = vmatprep.subr.mxu0 0.0
    %144 = vmatpush2.msra.mxu0 0.0
    %145 = vmatprep.subr.mxu0 0.0
    %146 = vmatpush2.msra.mxu0 0.0
    %147 = vmatprep.subr.mxu0 0.0
    %148 = vmatpush2.msra.mxu0 0.0
    %149 = vmatprep.subr.mxu0 0.0
    %150 = vmatpush2.msra.mxu0 0.0
    %151 = vmatprep.subr.mxu0 0.0
    %152 = vmatpush2.msra.mxu0 0.0
    %153 = vmatprep.subr.mxu0 0.0
    %154 = vmatpush2.msra.mxu0 0.0
    %155 = vmatprep.mubr.f32.mxu0 0.0
    %156 = vmatmul.mubr.f32.gmra.mxu0 %v67
    %v157 = vpop.f32.mrf.mxu0
    %v158 = vadd.f32 %v89, %v157
    %v159 = vpop.f32.mrf.mxu0
    %160 = vdwg.mxu0
    %v161 = vmax.f32 %v158, 0.0
    %v162 = vld [vmem:[#allocation4] sm:$0xff]
    %v163 = vld [vmem:[#allocation4 + $0x8] sm:$0xff]
    %v164 = vld [vmem:[#allocation4 + $0x10] sm:$0xff]
    %v165 = vld [vmem:[#allocation4 + $0x18] sm:$0xff]
    %v166 = vld [vmem:[#allocation4 + $0x20] sm:$0xff]
    %v167 = vld [vmem:[#allocation4 + $0x28] sm:$0xff]
    %v168 = vld [vmem:[#allocation4 + $0x30] sm:$0xff]
    %v169 = vld [vmem:[#allocation4 + $0x38] sm:$0xff]
    %v170 = vld [vmem:[#allocation4 + $0x40] sm:$0xff]
    %v171 = vld [vmem:[#allocation4 + $0x48] sm:$0xff]
    %v172 = vld [vmem:[#allocation4 + $0x50] sm:$0xff]
    %v173 = vld [vmem:[#allocation4 + $0x58] sm:$0xff]
    %v174 = vld [vmem:[#allocation4 + $0x60] sm:$0xff]
    %v175 = vld [vmem:[#allocation4 + $0x68] sm:$0xff]
    %v176 = vld [vmem:[#allocation4 + $0x70] sm:$0xff]
    %v177 = vld [vmem:[#allocation4 + $0x78] sm:$0xff]
    %v178 = vld [vmem:[#allocation4 + $0x80] sm:$0xff]
    %v179 = vld [vmem:[#allocation4 + $0x88] sm:$0xff]
    %v180 = vld [vmem:[#allocation4 + $0x90] sm:$0xff]
    %v181 = vld [vmem:[#allocation4 + $0x98] sm:$0xff]
    %v182 = vld [vmem:[#allocation4 + $0xa0] sm:$0xff]
    %v183 = vld [vmem:[#allocation4 + $0xa8] sm:$0xff]
    %v184 = vld [vmem:[#allocation4 + $0xb0] sm:$0xff]
    %v185 = vld [vmem:[#allocation4 + $0xb8] sm:$0xff]
    %v186 = vld [vmem:[#allocation4 + $0xc0] sm:$0xff]
    %v187 = vld [vmem:[#allocation4 + $0xc8] sm:$0xff]
    %v188 = vld [vmem:[#allocation4 + $0xd0] sm:$0xff]
    %v189 = vld [vmem:[#allocation4 + $0xd8] sm:$0xff]
    %v190 = vld [vmem:[#allocation4 + $0xe0] sm:$0xff]
    %v191 = vld [vmem:[#allocation4 + $0xe8] sm:$0xff]
    %v192 = vld [vmem:[#allocation4 + $0xf0] sm:$0xff]
    %v193 = vld [vmem:[#allocation4 + $0xf8] sm:$0xff]
    %v194 = vld [vmem:[%s4] sm:$0x3]
    %v196 = vlaneseq
    %v197 = vshrl.u32 %v196, 7
    %v198 = vsub.s32 0, %v197
    %v199 = vrot.slane %v194, %v198
    %v200 = vlaneseq
    %v201 = vshrl.u32 %v200, 7
    %v202 = vsub.s32 1, %v201
    %v203 = vrot.slane %v194, %v202
    %206 = vmatprep.subr.mxu0 %v193
    %207 = vmatpush1.msra.mxu0 %v192
    %208 = vmatprep.subr.mxu0 %v191
    %209 = vmatpush1.msra.mxu0 %v190
    %210 = vmatprep.subr.mxu0 %v189
    %211 = vmatpush1.msra.mxu0 %v188
    %212 = vmatprep.subr.mxu0 %v187
    %213 = vmatpush1.msra.mxu0 %v186
    %214 = vmatprep.subr.mxu0 %v185
    %215 = vmatpush1.msra.mxu0 %v184
    %216 = vmatprep.subr.mxu0 %v183
    %217 = vmatpush1.msra.mxu0 %v182
    %218 = vmatprep.subr.mxu0 %v181
    %219 = vmatpush1.msra.mxu0 %v180
    %220 = vmatprep.subr.mxu0 %v179
    %221 = vmatpush1.msra.mxu0 %v178
    %222 = vmatprep.subr.mxu0 %v177
    %223 = vmatpush1.msra.mxu0 %v176
    %224 = vmatprep.subr.mxu0 %v175
    %225 = vmatpush1.msra.mxu0 %v174
    %226 = vmatprep.subr.mxu0 %v173
    %227 = vmatpush1.msra.mxu0 %v172
    %228 = vmatprep.subr.mxu0 %v171
    %229 = vmatpush1.msra.mxu0 %v170
    %230 = vmatprep.subr.mxu0 %v169
    %231 = vmatpush1.msra.mxu0 %v168
    %232 = vmatprep.subr.mxu0 %v167
    %233 = vmatpush1.msra.mxu0 %v166
    %234 = vmatprep.subr.mxu0 %v165
    %235 = vmatpush1.msra.mxu0 %v164
    %236 = vmatprep.subr.mxu0 %v163
    %237 = vmatpush1.msra.mxu0 %v162
    %238 = vmatprep.subr.mxu0 0.0
    %239 = vmatpush2.msra.mxu0 0.0
    %240 = vmatprep.subr.mxu0 0.0
    %241 = vmatpush2.msra.mxu0 0.0
    %242 = vmatprep.subr.mxu0 0.0
    %243 = vmatpush2.msra.mxu0 0.0
    %244 = vmatprep.subr.mxu0 0.0
    %245 = vmatpush2.msra.mxu0 0.0
    %246 = vmatprep.subr.mxu0 0.0
    %247 = vmatpush2.msra.mxu0 0.0
    %248 = vmatprep.subr.mxu0 0.0
    %249 = vmatpush2.msra.mxu0 0.0
    %250 = vmatprep.subr.mxu0 0.0
    %251 = vmatpush2.msra.mxu0 0.0
    %252 = vmatprep.subr.mxu0 0.0
    %253 = vmatpush2.msra.mxu0 0.0
    %254 = vmatprep.subr.mxu0 0.0
    %255 = vmatpush2.msra.mxu0 0.0
    %256 = vmatprep.subr.mxu0 0.0
    %257 = vmatpush2.msra.mxu0 0.0
    %258 = vmatprep.subr.mxu0 0.0
    %259 = vmatpush2.msra.mxu0 0.0
    %260 = vmatprep.subr.mxu0 0.0
    %261 = vmatpush2.msra.mxu0 0.0
    %262 = vmatprep.subr.mxu0 0.0
    %263 = vmatpush2.msra.mxu0 0.0
    %264 = vmatprep.subr.mxu0 0.0
    %265 = vmatpush2.msra.mxu0 0.0
    %266 = vmatprep.subr.mxu0 0.0
    %267 = vmatpush2.msra.mxu0 0.0
    %268 = vmatprep.subr.mxu0 0.0
    %269 = vmatpush2.msra.mxu0 0.0
    %270 = vmatprep.mubr.f32.mxu0 0.0
    %271 = vmatmul.mubr.f32.gmra.mxu0 %v161
    %v272 = vpop.f32.mrf.mxu0
    %v273 = vadd.f32 %v199, %v272
    %v274 = vpop.f32.mrf.mxu0
    %v275 = vadd.f32 %v203, %v274
    %276 = vdwg.mxu0
    %v277 = vmax.f32 %v273, 0.0
    %v278 = vmax.f32 %v275, 0.0
    %v279 = vld [vmem:[#allocation6] sm:$0xff]
    %v280 = vld [vmem:[#allocation6 + $0x8] sm:$0xff]
    %v281 = vld [vmem:[#allocation6 + $0x10] sm:$0xff]
    %v282 = vld [vmem:[#allocation6 + $0x18] sm:$0xff]
    %v283 = vld [vmem:[#allocation6 + $0x20] sm:$0xff]
    %v284 = vld [vmem:[#allocation6 + $0x28] sm:$0xff]
    %v285 = vld [vmem:[#allocation6 + $0x30] sm:$0xff]
    %v286 = vld [vmem:[#allocation6 + $0x38] sm:$0xff]
    %v287 = vld [vmem:[#allocation6 + $0x40] sm:$0xff]
    %v288 = vld [vmem:[#allocation6 + $0x48] sm:$0xff]
    %v289 = vld [vmem:[#allocation6 + $0x50] sm:$0xff]
    %v290 = vld [vmem:[#allocation6 + $0x58] sm:$0xff]
    %v291 = vld [vmem:[#allocation6 + $0x60] sm:$0xff]
    %v292 = vld [vmem:[#allocation6 + $0x68] sm:$0xff]
    %v293 = vld [vmem:[#allocation6 + $0x70] sm:$0xff]
    %v294 = vld [vmem:[#allocation6 + $0x78] sm:$0xff]
    %v295 = vld [vmem:[#allocation6 + $0x80] sm:$0xff]
    %v296 = vld [vmem:[#allocation6 + $0x88] sm:$0xff]
    %v297 = vld [vmem:[#allocation6 + $0x90] sm:$0xff]
    %v298 = vld [vmem:[#allocation6 + $0x98] sm:$0xff]
    %v299 = vld [vmem:[#allocation6 + $0xa0] sm:$0xff]
    %v300 = vld [vmem:[#allocation6 + $0xa8] sm:$0xff]
    %v301 = vld [vmem:[#allocation6 + $0xb0] sm:$0xff]
    %v302 = vld [vmem:[#allocation6 + $0xb8] sm:$0xff]
    %v303 = vld [vmem:[#allocation6 + $0xc0] sm:$0xff]
    %v304 = vld [vmem:[#allocation6 + $0xc8] sm:$0xff]
    %v305 = vld [vmem:[#allocation6 + $0xd0] sm:$0xff]
    %v306 = vld [vmem:[#allocation6 + $0xd8] sm:$0xff]
    %v307 = vld [vmem:[#allocation6 + $0xe0] sm:$0xff]
    %v308 = vld [vmem:[#allocation6 + $0xe8] sm:$0xff]
    %v309 = vld [vmem:[#allocation6 + $0xf0] sm:$0xff]
    %v310 = vld [vmem:[#allocation6 + $0xf8] sm:$0xff]
    %v311 = vld [vmem:[%s6] sm:$0x1]
    %v313 = vlaneseq
    %v314 = vshrl.u32 %v313, 7
    %v315 = vsub.s32 0, %v314
    %v316 = vrot.slane %v311, %v315
    %318 = vmatprep.subr.mxu0 0.0
    %319 = vmatpush1.msra.mxu0 %v294
    %320 = vmatprep.subr.mxu0 0.0
    %321 = vmatpush1.msra.mxu0 %v293
    %322 = vmatprep.subr.mxu0 0.0
    %323 = vmatpush1.msra.mxu0 %v292
    %324 = vmatprep.subr.mxu0 0.0
    %325 = vmatpush1.msra.mxu0 %v291
    %326 = vmatprep.subr.mxu0 0.0
    %327 = vmatpush1.msra.mxu0 %v290
    %328 = vmatprep.subr.mxu0 0.0
    %329 = vmatpush1.msra.mxu0 %v289
    %330 = vmatprep.subr.mxu0 0.0
    %331 = vmatpush1.msra.mxu0 %v288
    %332 = vmatprep.subr.mxu0 0.0
    %333 = vmatpush1.msra.mxu0 %v287
    %334 = vmatprep.subr.mxu0 0.0
    %335 = vmatpush1.msra.mxu0 %v286
    %336 = vmatprep.subr.mxu0 0.0
    %337 = vmatpush1.msra.mxu0 %v285
    %338 = vmatprep.subr.mxu0 0.0
    %339 = vmatpush1.msra.mxu0 %v284
    %340 = vmatprep.subr.mxu0 0.0
    %341 = vmatpush1.msra.mxu0 %v283
    %342 = vmatprep.subr.mxu0 0.0
    %343 = vmatpush1.msra.mxu0 %v282
    %344 = vmatprep.subr.mxu0 0.0
    %345 = vmatpush1.msra.mxu0 %v281
    %346 = vmatprep.subr.mxu0 0.0
    %347 = vmatpush1.msra.mxu0 %v280
    %348 = vmatprep.subr.mxu0 0.0
    %349 = vmatpush1.msra.mxu0 %v279
    %350 = vmatprep.subr.mxu0 0.0
    %351 = vmatpush2.msra.mxu0 %v310
    %352 = vmatprep.subr.mxu0 0.0
    %353 = vmatpush2.msra.mxu0 %v309
    %354 = vmatprep.subr.mxu0 0.0
    %355 = vmatpush2.msra.mxu0 %v308
    %356 = vmatprep.subr.mxu0 0.0
    %357 = vmatpush2.msra.mxu0 %v307
    %358 = vmatprep.subr.mxu0 0.0
    %359 = vmatpush2.msra.mxu0 %v306
    %360 = vmatprep.subr.mxu0 0.0
    %361 = vmatpush2.msra.mxu0 %v305
    %362 = vmatprep.subr.mxu0 0.0
    %363 = vmatpush2.msra.mxu0 %v304
    %364 = vmatprep.subr.mxu0 0.0
    %365 = vmatpush2.msra.mxu0 %v303
    %366 = vmatprep.subr.mxu0 0.0
    %367 = vmatpush2.msra.mxu0 %v302
    %368 = vmatprep.subr.mxu0 0.0
    %369 = vmatpush2.msra.mxu0 %v301
    %370 = vmatprep.subr.mxu0 0.0
    %371 = vmatpush2.msra.mxu0 %v300
    %372 = vmatprep.subr.mxu0 0.0
    %373 = vmatpush2.msra.mxu0 %v299
    %374 = vmatprep.subr.mxu0 0.0
    %375 = vmatpush2.msra.mxu0 %v298
    %376 = vmatprep.subr.mxu0 0.0
    %377 = vmatpush2.msra.mxu0 %v297
    %378 = vmatprep.subr.mxu0 0.0
    %379 = vmatpush2.msra.mxu0 %v296
    %380 = vmatprep.subr.mxu0 0.0
    %381 = vmatpush2.msra.mxu0 %v295
    %382 = vmatprep.mubr.f32.mxu0 %v278
    %383 = vmatmul.mubr.f32.gmra.mxu0 %v277
    %v384 = vpop.f32.mrf.mxu0
    %v385 = vadd.f32 %v316, %v384
    %v386 = vpop.f32.mrf.mxu0
    %387 = vdwg.mxu0
    %388 = vadd.xlane.f32.xlu0 %v385
    %v389 = vpop.xlane.xlu0 %388
    %v390 = vsub.f32 %v389, %v385
    %v391 = vmul.f32 %v390, 0.25
    %v392 = vsub.f32 %v385, %v391
    %394 = vset.pattern.permute.xlu0 0
    %395 = vperm.xlu0 %394, %v392
    %v396 = vpop.permute.xlu0 %395
    %v398 = vadd.f32 %v385, %v396
    %399 = vst [vmem:[%s7] sm:$0xff] %v398
    // Predicated region
    $region42: #{dueling_q_forward.1} parent=1 // pred_check
      _
    $region43: #{dueling_q_forward.1} parent=1 // pred_check_branch
      %401 = sbr.rel (0) target = $region45
    $region44: #{dueling_q_forward.1} parent=1 // pred_region
      _
    $region45: #{dueling_q_forward.1} parent=1 // pred_fallthru
      _
    // Predicated region
    $region46: #{dueling_q_forward.1} parent=1 // pred_check
      _
    $region47: #{dueling_q_forward.1} parent=1 // pred_check_branch
      %403 = sbr.rel (0) target = $region49
    $region48: #{dueling_q_forward.1} parent=1 // pred_region
      _
    $region49: #{dueling_q_forward.1} parent=1 // pred_fallthru
      _
    %404 = vsyncpa [#allocation3], 1
    %405 = vsyncpa [#allocation5], 1

</llo_original>
